<compile_context>
chip_gen: v6e
topology: v6e:2x2x1
jax: 0.10.0
libtpu: 0.0.40
codegen_flags: <defaults>
</compile_context>

<pallas_src>
import functools

import jax
import jax.numpy as jnp
from jax.experimental import pallas as pl
from jax.experimental.pallas import tpu as pltpu

NUM_OUT = 37                 # atom37 channels
_SMALL_N_FALLBACK = 128      # below this many rows, plain XLA wins


def _round_up(x: int, m: int) -> int:
    return ((x + m - 1) // m) * m


def prepare_experimentally_resolved_params(weight, bias,
                                           compute_dtype=jnp.bfloat16):
    """One-time parameter prep (outside the hot path).

    weight: [37, C] (torch nn.Linear layout), bias: [37]
    returns wt [C, 37] in compute_dtype, bias [1, 37] f32.
    """
    wt = weight.T.astype(compute_dtype)                 # (C, 37)
    b2 = bias.reshape(1, NUM_OUT).astype(jnp.float32)   # (1, 37)
    return wt, b2


def _logits_kernel(x_ref, wt_ref, b_ref, o_ref):
    # x_ref : (TN, C) f32    wt_ref : (C, 37) bf16 (VMEM-resident across steps)
    # b_ref : (1, 37) f32    o_ref  : (TN, 37) f32
    x = x_ref[...].astype(jnp.bfloat16)      # cast in-kernel: HBM sees f32 once
    acc = jnp.dot(x, wt_ref[...], preferred_element_type=jnp.float32)
    o_ref[...] = acc + b_ref[...]            # bias row broadcasts over TN rows


@functools.partial(jax.jit, static_argnames=("block_rows",))
def experimentally_resolved_head_forward(single, wt, bias2,
                                         *, block_rows: int = 1024):
    """single: [N, C] float32; wt: [C, 37] bf16; bias2: [1, 37] f32.

    Returns logits [N, 37] float32 (matches nn.Linear(num_feat_1d, 37)).
    """
    n, c = single.shape

    # Tiny-N fast path: pallas_call launch/pipeline overhead would dominate.
    if n < _SMALL_N_FALLBACK:
        acc = jnp.dot(single.astype(jnp.bfloat16), wt,
                      preferred_element_type=jnp.float32)
        return acc + bias2

    # Row tile: multiple of 16 (bf16 row packing), capped by block_rows, and
    # sized so the grid has >= 2 steps (v7x: 2 TensorCores share "parallel").
    tn = min(block_rows, max(16, _round_up(-(-n // 2), 16)))
    grid = (pl.cdiv(n, tn),)

    cost = pl.CostEstimate(
        flops=2 * n * c * NUM_OUT,
        transcendentals=0,
        bytes_accessed=(n * c * 4            # x read (f32)
                        + c * NUM_OUT * 2    # resident bf16 weight read
                        + NUM_OUT * 4        # bias read
                        + n * NUM_OUT * 4),  # un-padded f32 output write
    )

    return pl.pallas_call(
        _logits_kernel,
        out_shape=jax.ShapeDtypeStruct((n, NUM_OUT), jnp.float32),
        grid_spec=pltpu.PrefetchScalarGridSpec(
            num_scalar_prefetch=0,
            grid=grid,
            in_specs=[
                pl.BlockSpec((tn, c), lambda i: (i, 0)),        # x row tile
                pl.BlockSpec((c, NUM_OUT), lambda i: (0, 0)),   # resident W^T
                pl.BlockSpec((1, NUM_OUT), lambda i: (0, 0)),   # resident bias
            ],
            out_specs=pl.BlockSpec((tn, NUM_OUT), lambda i: (i, 0)),
        ),
        compiler_params=pltpu.CompilerParams(
            dimension_semantics=("parallel",),
            vmem_limit_bytes=32 * 1024 * 1024),
        cost_estimate=cost,
    )(single, wt, bias2)


def _reference_checks(single, weight, bias, logits):
    n = single.shape[0]
    assert logits.shape == (n, NUM_OUT)
    # Tight check vs a reference using the same bf16-rounded inputs + f32 accum.
    ref_bf16 = (single.astype(jnp.bfloat16).astype(jnp.float32)
                @ weight.T.astype(jnp.bfloat16).astype(jnp.float32)) + bias
    assert jnp.allclose(logits, ref_bf16, atol=1e-4, rtol=1e-4)
    # Loose check vs the full-f32 reference (bf16 rounding only).
    ref_f32 = single @ weight.T + bias
    assert jnp.allclose(logits, ref_f32, atol=1e-2, rtol=1e-2)


if __name__ == "__main__":
    # Small shapes consistent with the module: num_feat_1d=32.
    num_feat_1d = 32

    key = jax.random.PRNGKey(0)
    k_x, k_w, k_b, k_xs = jax.random.split(key, 4)

    # Deterministic synthetic parameters (nn.Linear(num_feat_1d, 37) shapes).
    weight = jax.random.normal(k_w, (NUM_OUT, num_feat_1d), dtype=jnp.float32) * 0.02
    bias = jax.random.normal(k_b, (NUM_OUT,), dtype=jnp.float32) * 0.01

    # One-time weight prep (transpose + bf16 cast).
    wt, bias2 = prepare_experimentally_resolved_params(weight, bias)

    # --- Pallas path (N_res large enough to exercise the tiled kernel). ---
    n_res = 256
    single = jax.random.normal(k_x, (n_res, num_feat_1d), dtype=jnp.float32)
    logits = experimentally_resolved_head_forward(single, wt, bias2)
    logits = jax.block_until_ready(logits)
    _reference_checks(single, weight, bias, logits)

    # --- Tiny-N fallback path (e.g. N_res=8). ---
    single_small = jax.random.normal(k_xs, (8, num_feat_1d), dtype=jnp.float32)
    logits_small = experimentally_resolved_head_forward(single_small, wt, bias2)
    logits_small = jax.block_until_ready(logits_small)
    _reference_checks(single_small, weight, bias, logits_small)

    # TODO(synk): the module's .loss() (BCE-with-logits + masked mean) is not
    # part of forward() and is intentionally left out of the kernel.
    print("KERNEL_OK")
</pallas_src>

<mosaic_0001>
module attributes {stable_mosaic.version = 11 : i64} {
  func.func @_logits_kernel(%arg0: i32, %arg1: memref<128x32xf32, #tpu.memory_space<vmem>>, %arg2: memref<32x37xbf16, #tpu.memory_space<vmem>>, %arg3: memref<1x37xf32, #tpu.memory_space<vmem>>, %arg4: memref<128x37xf32, #tpu.memory_space<vmem>>) attributes {dimension_semantics = [#tpu.dimension_semantics<parallel>], iteration_bounds = array<i64: 2>, scalar_prefetch = 0 : i64, scratch_operands = 0 : i64, tpu.core_type = #tpu.core_type<tc>, window_params = [{transform_indices = @transform_0, window_bounds = array<i64: 128, 32>}, {pipeline_mode = #tpu.pipeline_mode<synchronous>, transform_indices = @transform_1, window_bounds = array<i64: 32, 37>}, {pipeline_mode = #tpu.pipeline_mode<synchronous>, transform_indices = @transform_2, window_bounds = array<i64: 1, 37>}, {transform_indices = @transform_3, window_bounds = array<i64: 128, 37>}]} {
    %c0 = arith.constant 0 : index
    %c0_0 = arith.constant 0 : index
    %0 = vector.load %arg1[%c0, %c0_0] : memref<128x32xf32, #tpu.memory_space<vmem>>, vector<128x32xf32>
    %1 = arith.truncf %0 : vector<128x32xf32> to vector<128x32xbf16>
    %c0_1 = arith.constant 0 : index
    %c0_2 = arith.constant 0 : index
    %2 = vector.load %arg2[%c0_1, %c0_2] : memref<32x37xbf16, #tpu.memory_space<vmem>>, vector<32x37xbf16>
    %cst = arith.constant dense<0.000000e+00> : vector<128x37xf32>
    %3 = tpu.matmul %1, %2, %cst {dimension_numbers = #tpu.dot_dimension_numbers<[1], [0], [0], [1], [0, 0, 1, 1], [], []>} : vector<128x32xbf16>, vector<32x37xbf16>, vector<128x37xf32> -> vector<128x37xf32>
    %c0_3 = arith.constant 0 : index
    %c0_4 = arith.constant 0 : index
    %4 = vector.load %arg3[%c0_3, %c0_4] : memref<1x37xf32, #tpu.memory_space<vmem>>, vector<1x37xf32>
    %5 = vector.broadcast %4 : vector<1x37xf32> to vector<128x37xf32>
    %6 = arith.addf %3, %5 : vector<128x37xf32>
    %c0_5 = arith.constant 0 : index
    %c0_6 = arith.constant 0 : index
    %7 = vector.load %arg4[%c0_5, %c0_6] : memref<128x37xf32, #tpu.memory_space<vmem>>, vector<128x37xf32>
    tpu.vector_store %arg4[%c0_5, %c0_6], %6 {strides = array<i32>} : memref<128x37xf32, #tpu.memory_space<vmem>>, vector<128x37xf32>,
    return
  }
  func.func @transform_0(%arg0: i32) -> (i32, i32) {
    %c0_i32 = arith.constant 0 : i32
    %c0_i32_0 = arith.constant 0 : i32
    return %arg0, %c0_i32 : i32, i32
  }
  func.func @transform_1(%arg0: i32) -> (i32, i32) {
    %c0_i32 = arith.constant 0 : i32
    %c0_i32_0 = arith.constant 0 : i32
    %c0_i32_1 = arith.constant 0 : i32
    return %c0_i32, %c0_i32_0 : i32, i32
  }
  func.func @transform_2(%arg0: i32) -> (i32, i32) {
    %c0_i32 = arith.constant 0 : i32
    %c0_i32_0 = arith.constant 0 : i32
    %c0_i32_1 = arith.constant 0 : i32
    return %c0_i32, %c0_i32_0 : i32, i32
  }
  func.func @transform_3(%arg0: i32) -> (i32, i32) {
    %c0_i32 = arith.constant 0 : i32
    %c0_i32_0 = arith.constant 0 : i32
    return %arg0, %c0_i32 : i32, i32
  }
}

</mosaic_0001>

<llo_original>
// kernel: experimentally_resolved_head_forward.1
$region0: #{experimentally_resolved_head_forward.1}
  #allocation0 [shape = 'u32[]', space=smem, size = 0x4, offset = 0x4, fixed_abs, tag = 'smem constant byte address 0x4 - core index']
  #allocation1 [shape = 'u32[144,128]{1,0:T(1,128)}', space=vmem, size = 0x12000, scoped, tag = 'internal scratch']
  %s0 = inlined_call_operand.vmem [shape: f32[256,32], index: 0, kind: input, shape index: {}]
  %s1 = inlined_call_operand.vmem [shape: bf16[32,37], index: 1, kind: input, shape index: {}]
  %s2 = inlined_call_operand.vmem [shape: f32[1,37], index: 2, kind: input, shape index: {}]
  %s3 = inlined_call_operand.vmem [shape: f32[256,37], index: 3, kind: output, shape index: {}]
  %s4 = sld [smem:[#allocation0]]
  $region45: #{experimentally_resolved_head_forward.1} parent=0
    _
  %s6 = ssub.s32 1, %s4
  %s7 = scalar_select 0, %s6, %s4
  loop: start=0, step=1, limit=4
  $region2: #{experimentally_resolved_head_forward.1} parent=0 // loop_pre_header
    _
  $region3: #{experimentally_resolved_head_forward.1} parent=0 // loop_header
    %s9 = sphi 0, %s13
    %p10 = scmp.ge.s32.totalorder %s9, 4
    %s19 = sphi 0, %s21
    %s22 = sphi 0, %s19
    %s23 = sphi 0, %s22
    %s39 = sphi 0, %s23
    %s43 = sphi 0, %s43
    %s45 = sphi 0, %s43
    %s46 = sphi 0, %s45
    %s60 = sphi 0, %s46
    %s64 = sphi 0, %s64
    %s66 = sphi 0, %s64
    %s67 = sphi 0, %s66
    %s81 = sphi 0, %s67
    %s87 = sphi 0, %s89
    %s90 = sphi 0, %s87
    %s91 = sphi 0, %s90
    %s107 = sphi 0, %s91
  $region4: #{experimentally_resolved_head_forward.1} parent=0 // loop_header_branch
    %12 = sbr.rel (%p10) target = $region8
  $region5: #{experimentally_resolved_head_forward.1} parent=0 // loop_body
    %s14 = ssub.s32 %s9, 1
    %s15 = ssub.s32 %s9, 2
    %s16 = sadd.s32 %s9, 1
    %s17 = ssub.s32 %s9, %s16
    %p18 = scmp.eq.s32.totalorder %s17, 0
    %s20 = sadd.s32 %s19, 1
    %s21 = scalar_select %p18, %s19, %s20
    %p24 = pneg %p18
    %p25 = scmp.eq.s32.totalorder %s9, 1
    %p26 = por %p24, %p25
    %p27 = scmp.ne.s32.totalorder %s19, %s22
    %p28 = scmp.eq.s32.totalorder %s9, 0
    %p29 = por %p27, %p28
    %p30 = scmp.ne.s32.totalorder %s19, %s22
    %p31 = scmp.eq.s32.totalorder %s14, 1
    %p32 = por %p30, %p31
    %p33 = scmp.ne.s32.totalorder %s22, %s23
    %p34 = scmp.eq.s32.totalorder %s14, 0
    %p35 = por %p33, %p34
    %p36 = scmp.ne.s32.totalorder %s22, %s23
    %p37 = scmp.eq.s32.totalorder %s15, 1
    %p38 = por %p36, %p37
    %p40 = scmp.ne.s32.totalorder %s23, %s39
    %p41 = scmp.eq.s32.totalorder %s15, 0
    %p42 = por %p40, %p41
    %s44 = sadd.s32 %s43, 1
    %p47 = scmp.eq.s32.totalorder %s9, 1
    %p48 = scmp.ne.s32.totalorder %s43, %s45
    %p49 = scmp.eq.s32.totalorder %s9, 0
    %p50 = por %p48, %p49
    %p51 = scmp.ne.s32.totalorder %s43, %s45
    %p52 = scmp.eq.s32.totalorder %s14, 1
    %p53 = por %p51, %p52
    %p54 = scmp.ne.s32.totalorder %s45, %s46
    %p55 = scmp.eq.s32.totalorder %s14, 0
    %p56 = por %p54, %p55
    %p57 = scmp.ne.s32.totalorder %s45, %s46
    %p58 = scmp.eq.s32.totalorder %s15, 1
    %p59 = por %p57, %p58
    %p61 = scmp.ne.s32.totalorder %s46, %s60
    %p62 = scmp.eq.s32.totalorder %s15, 0
    %p63 = por %p61, %p62
    %s65 = sadd.s32 %s64, 1
    %p68 = scmp.eq.s32.totalorder %s9, 1
    %p69 = scmp.ne.s32.totalorder %s64, %s66
    %p70 = scmp.eq.s32.totalorder %s9, 0
    %p71 = por %p69, %p70
    %p72 = scmp.ne.s32.totalorder %s64, %s66
    %p73 = scmp.eq.s32.totalorder %s14, 1
    %p74 = por %p72, %p73
    %p75 = scmp.ne.s32.totalorder %s66, %s67
    %p76 = scmp.eq.s32.totalorder %s14, 0
    %p77 = por %p75, %p76
    %p78 = scmp.ne.s32.totalorder %s66, %s67
    %p79 = scmp.eq.s32.totalorder %s15, 1
    %p80 = por %p78, %p79
    %p82 = scmp.ne.s32.totalorder %s67, %s81
    %p83 = scmp.eq.s32.totalorder %s15, 0
    %p84 = por %p82, %p83
    %s85 = ssub.s32 %s9, %s16
    %p86 = scmp.eq.s32.totalorder %s85, 0
    %s88 = sadd.s32 %s87, 1
    %s89 = scalar_select %p86, %s87, %s88
    %p92 = pneg %p86
    %p93 = scmp.eq.s32.totalorder %s9, 1
    %p94 = por %p92, %p93
    %p95 = scmp.ne.s32.totalorder %s87, %s90
    %p96 = scmp.eq.s32.totalorder %s9, 0
    %p97 = por %p95, %p96
    %p98 = scmp.ne.s32.totalorder %s87, %s90
    %p99 = scmp.eq.s32.totalorder %s14, 1
    %p100 = por %p98, %p99
    %p101 = scmp.ne.s32.totalorder %s90, %s91
    %p102 = scmp.eq.s32.totalorder %s14, 0
    %p103 = por %p101, %p102
    %p104 = scmp.ne.s32.totalorder %s90, %s91
    %p105 = scmp.eq.s32.totalorder %s15, 1
    %p106 = por %p104, %p105
    %p108 = scmp.ne.s32.totalorder %s91, %s107
    %p109 = scmp.eq.s32.totalorder %s15, 0
    %p110 = por %p108, %p109
    %p111 = scmp.le.s32.totalorder 1, %s9
    %p112 = scmp.lt.s32.totalorder %s9, 3
    %p113 = pnand %p111, %p112
    %p114 = pneg %p113
    // Predicated region
    $region9: #{experimentally_resolved_head_forward.1} parent=5 // pred_check
      _
    $region10: #{experimentally_resolved_head_forward.1} parent=5 // pred_check_branch
      %116 = sbr.rel (%p113) target = $region12
    $region11: #{experimentally_resolved_head_forward.1} parent=5 // pred_region
      %s117 = ssub.s32 %s9, 1
      // Predicated region
      $region13: #{experimentally_resolved_head_forward.1} parent=11 // pred_check
        %p118 = pneg %p56
      $region14: #{experimentally_resolved_head_forward.1} parent=11 // pred_check_branch
        %120 = sbr.rel (%p118) target = $region16
      $region15: #{experimentally_resolved_head_forward.1} parent=11 // pred_region
        _
      $region16: #{experimentally_resolved_head_forward.1} parent=11 // pred_fallthru
        _
      // Predicated region
      $region17: #{experimentally_resolved_head_forward.1} parent=11 // pred_check
        %p121 = pneg %p77
      $region18: #{experimentally_resolved_head_forward.1} parent=11 // pred_check_branch
        %123 = sbr.rel (%p121) target = $region20
      $region19: #{experimentally_resolved_head_forward.1} parent=11 // pred_region
        _
      $region20: #{experimentally_resolved_head_forward.1} parent=11 // pred_fallthru
        _
    $region12: #{experimentally_resolved_head_forward.1} parent=5 // pred_fallthru
      _
    %p124 = scmp.lt.s32.totalorder %s9, 2
    // Predicated region
    $region21: #{experimentally_resolved_head_forward.1} parent=5 // pred_check
      %p125 = pneg %p124
    $region22: #{experimentally_resolved_head_forward.1} parent=5 // pred_check_branch
      %127 = sbr.rel (%p125) target = $region24
    $region23: #{experimentally_resolved_head_forward.1} parent=5 // pred_region
      // Predicated region
      $region25: #{experimentally_resolved_head_forward.1} parent=23 // pred_check
        %p128 = pneg %p29
      $region26: #{experimentally_resolved_head_forward.1} parent=23 // pred_check_branch
        %130 = sbr.rel (%p128) target = $region28
      $region27: #{experimentally_resolved_head_forward.1} parent=23 // pred_region
        %s131 = smul.u32 16, %s9
        %p132 = scmp.lt.s32.totalorder %s131, 31
        %s133 = scalar_select %p132, %s131, 31
        %s134 = smul.addr %s133, 8
        %s135 = scalar_lea.vmem %s0, %s134
        %s136 = smul.u32 16, %s9
      $region28: #{experimentally_resolved_head_forward.1} parent=23 // pred_fallthru
        _
    $region24: #{experimentally_resolved_head_forward.1} parent=5 // pred_fallthru
      _
    %p137 = scmp.le.s32.totalorder 1, %s9
    %p138 = scmp.lt.s32.totalorder %s9, 3
    %p139 = pnand %p137, %p138
    %p140 = pneg %p139
    // Predicated region
    $region29: #{experimentally_resolved_head_forward.1} parent=5 // pred_check
      _
    $region30: #{experimentally_resolved_head_forward.1} parent=5 // pred_check_branch
      %142 = sbr.rel (%p139) target = $region32
    $region31: #{experimentally_resolved_head_forward.1} parent=5 // pred_region
      %s143 = ssub.s32 %s9, 1
      %s144 = smul.u32 16, %s14
      %p145 = scmp.lt.s32.totalorder %s144, 31
      %s146 = scalar_select %p145, %s144, 31
      %s147 = smul.addr %s146, 8
      %s148 = scalar_lea.vmem %s0, %s147
      %p149 = pneg %p35
      %p150 = pneg %p32
      %p151 = pneg %p56
      %p152 = pneg %p53
      %p153 = pneg %p77
      %p154 = pneg %p74
      %p155 = pneg %p103
      %p156 = pneg %p100
      %s157 = smul.u32 16, %s14
      %p158 = scmp.lt.s32.totalorder %s157, 31
      %s159 = scalar_select %p158, %s157, 31
      %s160 = smul.addr %s159, 8
      %s161 = scalar_lea.vmem %s3, %s160
      %s162 = smul.u32 16, %s14
      %p163 = scmp.lt.s32.totalorder %s162, 31
      %s164 = scalar_select %p163, %s162, 31
      %s165 = smul.addr %s164, 8
      %s166 = scalar_lea.vmem %s0, %s165
      %s167 = smul.u32 16, %s14
      %s168 = smul.u32 16, %s14
      %p169 = scmp.lt.s32.totalorder %s168, 31
      %s170 = scalar_select %p169, %s168, 31
      %s171 = smul.addr %s170, 8
      %s172 = scalar_lea.vmem %s3, %s171
      %s173 = smul.u32 16, %s14
      %v175 = vld [vmem:[%s166] sm:$0xff]
      %v176 = vld [vmem:[%s166 + $0x8] sm:$0xff]
      %v177 = vld [vmem:[%s166 + $0x10] sm:$0xff]
      %v178 = vld [vmem:[%s166 + $0x18] sm:$0xff]
      %v179 = vld [vmem:[%s166 + $0x20] sm:$0xff]
      %v180 = vld [vmem:[%s166 + $0x28] sm:$0xff]
      %v181 = vld [vmem:[%s166 + $0x30] sm:$0xff]
      %v182 = vld [vmem:[%s166 + $0x38] sm:$0xff]
      %v183 = vld [vmem:[%s166 + $0x40] sm:$0xff]
      %v184 = vld [vmem:[%s166 + $0x48] sm:$0xff]
      %v185 = vld [vmem:[%s166 + $0x50] sm:$0xff]
      %v186 = vld [vmem:[%s166 + $0x58] sm:$0xff]
      %v187 = vld [vmem:[%s166 + $0x60] sm:$0xff]
      %v188 = vld [vmem:[%s166 + $0x68] sm:$0xff]
      %v189 = vld [vmem:[%s166 + $0x70] sm:$0xff]
      %v190 = vld [vmem:[%s166 + $0x78] sm:$0xff]
      %v191 = vpack.c.bf16 %v176, %v175
      %v192 = vpack.c.bf16 %v178, %v177
      %v193 = vpack.c.bf16 %v180, %v179
      %v194 = vpack.c.bf16 %v182, %v181
      %v195 = vpack.c.bf16 %v184, %v183
      %v196 = vpack.c.bf16 %v186, %v185
      %v197 = vpack.c.bf16 %v188, %v187
      %v198 = vpack.c.bf16 %v190, %v189
      %v199 = vld [vmem:[%s1] sm:$0xf]
      %v200 = vld [vmem:[%s1 + $0x4] sm:$0xf]
      %v201 = vld [vmem:[%s1 + $0x8] sm:$0xf]
      %v202 = vld [vmem:[%s1 + $0xc] sm:$0xf]
      %v203 = vld [vmem:[%s2] sm:$0x1]
      %v205 = vlaneseq
      %v206 = vshrl.u32 %v205, 7
      %v207 = vsub.s32 0, %v206
      %v208 = vrot.slane %v203, %v207
      %v214 = vunpack.c.l.b16 %v199
      %v215 = vunpack.c.l.b16 %v200
      %v216 = vunpack.c.l.b16 %v201
      %v217 = vunpack.c.l.b16 %v202
      %v218 = vpack.c.b16 %v215, %v214
      %v219 = vpack.c.b16 %v217, %v216
      %vm222 = vcmask 261120
      %v224 = vsel %vm222, %v191, 0
      %v227 = vsel %vm222, %v192, 0
      %v230 = vsel %vm222, %v193, 0
      %v233 = vsel %vm222, %v194, 0
      %v236 = vsel %vm222, %v195, 0
      %v239 = vsel %vm222, %v196, 0
      %v242 = vsel %vm222, %v197, 0
      %v245 = vsel %vm222, %v198, 0
      %247 = vmatprep.subr.bf16.mxu0 0
      %248 = vmatpush1.bf16.msra.mxu0 0
      %249 = vmatprep.subr.bf16.mxu0 0
      %250 = vmatpush1.bf16.msra.mxu0 0
      %251 = vmatprep.subr.bf16.mxu0 0
      %252 = vmatpush1.bf16.msra.mxu0 0
      %253 = vmatprep.subr.bf16.mxu0 0
      %254 = vmatpush1.bf16.msra.mxu0 0
      %255 = vmatprep.subr.bf16.mxu0 0
      %256 = vmatpush1.bf16.msra.mxu0 0
      %257 = vmatprep.subr.bf16.mxu0 0
      %258 = vmatpush1.bf16.msra.mxu0 0
      %259 = vmatprep.subr.bf16.mxu0 0
      %260 = vmatpush1.bf16.msra.mxu0 %v219
      %261 = vmatprep.subr.bf16.mxu0 0
      %262 = vmatpush1.bf16.msra.mxu0 %v218
      %263 = vmatprep.subr.bf16.mxu0 0
      %264 = vmatpush2.bf16.msra.mxu0 0
      %265 = vmatprep.subr.bf16.mxu0 0
      %266 = vmatpush2.bf16.msra.mxu0 0
      %267 = vmatprep.subr.bf16.mxu0 0
      %268 = vmatpush2.bf16.msra.mxu0 0
      %269 = vmatprep.subr.bf16.mxu0 0
      %270 = vmatpush2.bf16.msra.mxu0 0
      %271 = vmatprep.subr.bf16.mxu0 0
      %272 = vmatpush2.bf16.msra.mxu0 0
      %273 = vmatprep.subr.bf16.mxu0 0
      %274 = vmatpush2.bf16.msra.mxu0 0
      %275 = vmatprep.subr.bf16.mxu0 0
      %276 = vmatpush2.bf16.msra.mxu0 0
      %277 = vmatprep.subr.bf16.mxu0 0
      %278 = vmatpush2.bf16.msra.mxu0 0
      %279 = vmatprep.mubr.bf16.mxu0 0
      %280 = vmatmul.mubr.bf16.gmra.mxu0 %v224
      %v281 = vpop.f32.mrf.mxu0
      %v282 = vadd.f32 %v208, %v281
      %v283 = vpop.f32.mrf.mxu0
      %v284 = vpop.f32.mrf.mxu0
      %v285 = vadd.f32 %v208, %v284
      %v286 = vpop.f32.mrf.mxu0
      %287 = vmatprep.mubr.bf16.mxu0 0
      %288 = vmatmul.mubr.bf16.gmra.mxu0 %v227
      %v289 = vpop.f32.mrf.mxu0
      %v290 = vadd.f32 %v208, %v289
      %v291 = vpop.f32.mrf.mxu0
      %v292 = vpop.f32.mrf.mxu0
      %v293 = vadd.f32 %v208, %v292
      %v294 = vpop.f32.mrf.mxu0
      %295 = vmatprep.mubr.bf16.mxu0 0
      %296 = vmatmul.mubr.bf16.gmra.mxu0 %v230
      %v297 = vpop.f32.mrf.mxu0
      %v298 = vadd.f32 %v208, %v297
      %v299 = vpop.f32.mrf.mxu0
      %v300 = vpop.f32.mrf.mxu0
      %v301 = vadd.f32 %v208, %v300
      %v302 = vpop.f32.mrf.mxu0
      %303 = vmatprep.mubr.bf16.mxu0 0
      %304 = vmatmul.mubr.bf16.gmra.mxu0 %v233
      %v305 = vpop.f32.mrf.mxu0
      %v306 = vadd.f32 %v208, %v305
      %v307 = vpop.f32.mrf.mxu0
      %v308 = vpop.f32.mrf.mxu0
      %v309 = vadd.f32 %v208, %v308
      %v310 = vpop.f32.mrf.mxu0
      %311 = vmatprep.mubr.bf16.mxu0 0
      %312 = vmatmul.mubr.bf16.gmra.mxu0 %v236
      %v313 = vpop.f32.mrf.mxu0
      %v314 = vadd.f32 %v208, %v313
      %v315 = vpop.f32.mrf.mxu0
      %v316 = vpop.f32.mrf.mxu0
      %v317 = vadd.f32 %v208, %v316
      %v318 = vpop.f32.mrf.mxu0
      %319 = vmatprep.mubr.bf16.mxu0 0
      %320 = vmatmul.mubr.bf16.gmra.mxu0 %v239
      %v321 = vpop.f32.mrf.mxu0
      %v322 = vadd.f32 %v208, %v321
      %v323 = vpop.f32.mrf.mxu0
      %v324 = vpop.f32.mrf.mxu0
      %v325 = vadd.f32 %v208, %v324
      %v326 = vpop.f32.mrf.mxu0
      %327 = vmatprep.mubr.bf16.mxu0 0
      %328 = vmatmul.mubr.bf16.gmra.mxu0 %v242
      %v329 = vpop.f32.mrf.mxu0
      %v330 = vadd.f32 %v208, %v329
      %v331 = vpop.f32.mrf.mxu0
      %v332 = vpop.f32.mrf.mxu0
      %v333 = vadd.f32 %v208, %v332
      %v334 = vpop.f32.mrf.mxu0
      %335 = vmatprep.mubr.bf16.mxu0 0
      %336 = vmatmul.mubr.bf16.gmra.mxu0 %v245
      %v337 = vpop.f32.mrf.mxu0
      %v338 = vadd.f32 %v208, %v337
      %v339 = vpop.f32.mrf.mxu0
      %v340 = vpop.f32.mrf.mxu0
      %v341 = vadd.f32 %v208, %v340
      %v342 = vpop.f32.mrf.mxu0
      %343 = vdwg.mxu0
      %vm344 = vcmask 302080
      %345 = vst.msk [vmem:[%s172] sm:$0xff] %vm344, %v282
      %346 = vst.msk [vmem:[%s172 + $0x8] sm:$0xff] %vm344, %v285
      %347 = vst.msk [vmem:[%s172 + $0x10] sm:$0xff] %vm344, %v290
      %348 = vst.msk [vmem:[%s172 + $0x18] sm:$0xff] %vm344, %v293
      %349 = vst.msk [vmem:[%s172 + $0x20] sm:$0xff] %vm344, %v298
      %350 = vst.msk [vmem:[%s172 + $0x28] sm:$0xff] %vm344, %v301
      %351 = vst.msk [vmem:[%s172 + $0x30] sm:$0xff] %vm344, %v306
      %352 = vst.msk [vmem:[%s172 + $0x38] sm:$0xff] %vm344, %v309
      %353 = vst.msk [vmem:[%s172 + $0x40] sm:$0xff] %vm344, %v314
      %354 = vst.msk [vmem:[%s172 + $0x48] sm:$0xff] %vm344, %v317
      %355 = vst.msk [vmem:[%s172 + $0x50] sm:$0xff] %vm344, %v322
      %356 = vst.msk [vmem:[%s172 + $0x58] sm:$0xff] %vm344, %v325
      %357 = vst.msk [vmem:[%s172 + $0x60] sm:$0xff] %vm344, %v330
      %358 = vst.msk [vmem:[%s172 + $0x68] sm:$0xff] %vm344, %v333
      %359 = vst.msk [vmem:[%s172 + $0x70] sm:$0xff] %vm344, %v338
      %360 = vst.msk [vmem:[%s172 + $0x78] sm:$0xff] %vm344, %v341
      %s361 = smul.u32 16, %s14
      %p362 = scmp.lt.s32.totalorder %s361, 31
      %s363 = scalar_select %p362, %s361, 31
      %s364 = smul.addr %s363, 8
      %s365 = scalar_lea.vmem %s3, %s364
      // Predicated region
      $region33: #{experimentally_resolved_head_forward.1} parent=31 // pred_check
        %p366 = pneg %p100
      $region34: #{experimentally_resolved_head_forward.1} parent=31 // pred_check_branch
        %368 = sbr.rel (%p366) target = $region36
      $region35: #{experimentally_resolved_head_forward.1} parent=31 // pred_region
        %s369 = smul.u32 16, %s14
      $region36: #{experimentally_resolved_head_forward.1} parent=31 // pred_fallthru
        _
    $region32: #{experimentally_resolved_head_forward.1} parent=5 // pred_fallthru
      _
    %p370 = scmp.le.s32.totalorder 2, %s9
    // Predicated region
    $region37: #{experimentally_resolved_head_forward.1} parent=5 // pred_check
      %p371 = pneg %p370
    $region38: #{experimentally_resolved_head_forward.1} parent=5 // pred_check_branch
      %373 = sbr.rel (%p371) target = $region40
    $region39: #{experimentally_resolved_head_forward.1} parent=5 // pred_region
      %s374 = ssub.s32 %s9, 2
      // Predicated region
      $region41: #{experimentally_resolved_head_forward.1} parent=39 // pred_check
        %p375 = pneg %p106
      $region42: #{experimentally_resolved_head_forward.1} parent=39 // pred_check_branch
        %377 = sbr.rel (%p375) target = $region44
      $region43: #{experimentally_resolved_head_forward.1} parent=39 // pred_region
        %s378 = smul.u32 16, %s15
        %p379 = scmp.lt.s32.totalorder %s378, 31
        %s380 = scalar_select %p379, %s378, 31
        %s381 = smul.addr %s380, 8
        %s382 = scalar_lea.vmem %s3, %s381
      $region44: #{experimentally_resolved_head_forward.1} parent=39 // pred_fallthru
        _
    $region40: #{experimentally_resolved_head_forward.1} parent=5 // pred_fallthru
      _
  $region6: #{experimentally_resolved_head_forward.1} parent=0 // loop_footer
    %s13 = sadd.s32 1, %s9
  $region7: #{experimentally_resolved_head_forward.1} parent=0 // loop_footer_branch
    %8 = sbr.rel target = $region3
  $region8: #{experimentally_resolved_head_forward.1} parent=0 // loop_exit
    _

</llo_original>
